<compile_context>
chip_gen: v5e
topology: v5e:2x2
jax: 0.10.0
libtpu: 0.0.40
codegen_flags: <defaults>
</compile_context>

<pallas_src>
from functools import partial

import jax
import jax.numpy as jnp
from jax.experimental import pallas as pl
from jax.experimental.pallas import tpu as pltpu


# --------------------------------------------------------------------------- #
# Kernels
# --------------------------------------------------------------------------- #
def _pool_kernel(x_ref, psum_ref):
    # x_ref:    (rt, hw_tile)   current spatial tile (zero-padded tail)
    # psum_ref: (rt, 128) f32   per-lane partial sums (output block, resident
    #                           across the inner "arbitrary" HW axis)
    @pl.when(pl.program_id(1) == 0)
    def _():
        psum_ref[...] = jnp.zeros_like(psum_ref)

    acc = psum_ref[...]
    hw_tile = x_ref.shape[-1]
    # VPU-only accumulation over static 128-lane slices; the cross-lane (XLU)
    # reduction is deferred to the wrapper on a tiny array.
    for c in range(hw_tile // 128):
        acc = acc + x_ref[:, c * 128:(c + 1) * 128].astype(jnp.float32)
    psum_ref[...] = acc


def _cond_conv_kernel(w_ref, x_ref, o_ref, *, use_vpu):
    # w_ref: (bt, C_out, C_in) f32 ; x_ref: (bt, C_in, hw_tile) ; o_ref: (bt, C_out, hw_tile)
    if use_vpu:
        # Tiny-channel regime: unrolled broadcast-MAC over C_in on the VPU
        # (f32 accumulation, weight kept in f32).
        x = x_ref[...]
        w = w_ref[...]
        c_in = x.shape[1]
        acc = w[:, :, 0:1] * x[:, 0:1, :].astype(jnp.float32)
        for k in range(1, c_in):
            acc = acc + w[:, :, k:k + 1] * x[:, k:k + 1, :].astype(jnp.float32)
        o_ref[...] = acc.astype(o_ref.dtype)
    else:
        # Large-channel regime: batched MXU matmul, f32 accumulation; cast the
        # (tiny) weight to the streaming dtype only at the operand.
        out = jnp.einsum("bok,bkn->bon",
                         w_ref[...].astype(x_ref.dtype), x_ref[...],
                         preferred_element_type=jnp.float32)
        o_ref[...] = out.astype(o_ref.dtype)


# --------------------------------------------------------------------------- #
# Tile / VMEM heuristics
# --------------------------------------------------------------------------- #
def _round_up(x, m):
    return ((x + m - 1) // m) * m


def _vmem_limit_bytes():
    phys = 128 * 1024 * 1024
    try:
        info = pltpu.get_tpu_info()
        phys = int(getattr(info, "vmem_capacity_bytes", phys)) or phys
    except Exception:
        pass
    # ~3/4 of physical, capped: ~96 MiB on v5e/v6e (128 MiB), ~48 MiB on v7x (64 MiB).
    return int(min((phys * 3) // 4, 96 * 1024 * 1024))


def _best_hw_tile(hw, max_tile):
    # Pick a multiple-of-128 tile minimizing padded-traffic * per-step-overhead.
    hw_needed = _round_up(hw, 128)
    max_tile = max(128, min(max_tile, 2048, hw_needed))
    best_t, best_score = 128, None
    for t in range(128, max_tile + 1, 128):
        score = _round_up(hw, t) * (1.0 + 256.0 / t)
        if best_score is None or score < best_score - 1e-9 or (
                abs(score - best_score) <= 1e-9 and t > best_t):
            best_t, best_score = t, score
    return best_t


def _pick_conv_tiles(b, c_in, c_out, hw, itemsize, vmem_limit):
    # Budget ~half the scoped VMEM for the double-buffered in+out blocks of Pass 2.
    budget = vmem_limit // 2
    hw_needed = _round_up(hw, 128)
    target = min(512, hw_needed)
    divisors = [d for d in range(min(b, 8), 0, -1) if b % d == 0]
    for bt in divisors:
        per_lane = 2 * bt * (c_in + c_out) * itemsize        # bytes per HW lane
        max_tile = (budget // max(per_lane, 1)) // 128 * 128
        if max_tile >= target:
            return bt, _best_hw_tile(hw, max_tile)
    per_lane = 2 * (c_in + c_out) * itemsize
    max_tile = max(128, (budget // max(per_lane, 1)) // 128 * 128)
    return 1, _best_hw_tile(hw, max_tile)


def _pick_row_tile(rows, hw_tile, itemsize, budget):
    # Rows per block for the pooling pass: a multiple-of-8 divisor of `rows`
    # sized to the VMEM budget, else the full (possibly ragged) extent.
    max_rt = max(8, min(1024, (budget // max(2 * hw_tile * itemsize, 1)) // 8 * 8))
    start = min((rows // 8) * 8, max_rt)
    for rt in range(start, 0, -8):
        if rows % rt == 0:
            return rt
    return rows


# --------------------------------------------------------------------------- #
# Forward
# --------------------------------------------------------------------------- #
def dynamic_conv(x_nchw, routing_weight, routing_bias, expert_weights):
    """x_nchw: (B, C_in, H, W); routing_weight: (C_in, E) (transpose of the torch
    nn.Linear weight); routing_bias: (E,); expert_weights: (E, C_out, C_in).
    Returns (B, C_out, H, W).

    TODO(synk): only the default CondConv2d config (kernel_size=1, stride=1,
    padding=0, dilation=1, groups=1, bias=False) is implemented; a general KxK
    grouped conv would need an im2col / shifted-accumulate path.
    """
    B, C_in, H, W = x_nchw.shape
    E, C_out, _ = expert_weights.shape
    HW = H * W
    itemsize = jnp.dtype(x_nchw.dtype).itemsize

    vmem_limit = _vmem_limit_bytes()
    bt, hw_tile = _pick_conv_tiles(B, C_in, C_out, HW, itemsize, vmem_limit)
    HW_pad = _round_up(HW, hw_tile)          # pad to a multiple of the chosen tile

    x3 = x_nchw.reshape(B, C_in, HW)
    if HW_pad != HW:
        x3 = jnp.pad(x3, ((0, 0), (0, 0), (0, HW_pad - HW)))   # zeros: pooling-exact

    # ---- Pass 1: Pallas pooling over a 2-D (B*C_in, HW_pad) view ------------
    rows = B * C_in
    x2 = x3.reshape(rows, HW_pad)            # contiguous reshape, no copy
    rt = _pick_row_tile(rows, hw_tile, itemsize, vmem_limit // 2)

    lane_sums = pl.pallas_call(
        _pool_kernel,
        out_shape=jax.ShapeDtypeStruct((rows, 128), jnp.float32),
        grid_spec=pltpu.PrefetchScalarGridSpec(
            num_scalar_prefetch=0,
            grid=(rows // rt, HW_pad // hw_tile),
            in_specs=[pl.BlockSpec((rt, hw_tile), lambda r, t: (r, t))],
            out_specs=pl.BlockSpec((rt, 128), lambda r, t: (r, 0)),
        ),
        compiler_params=pltpu.CompilerParams(
            dimension_semantics=("parallel", "arbitrary"),   # HW = reduction axis
            vmem_limit_bytes=vmem_limit),
    )(x2)

    # ---- Routing + expert mix (tiny; plain XLA, weight stays f32) -----------
    pooled = lane_sums.sum(axis=-1).reshape(B, C_in) * (1.0 / HW)          # (B, C_in) f32
    logits = pooled @ routing_weight.astype(jnp.float32) \
        + routing_bias.reshape(1, E).astype(jnp.float32)                   # (B, E)
    routing = jax.nn.sigmoid(logits)                                       # (B, E)
    w_mixed = jnp.einsum("be,eoc->boc", routing,
                         expert_weights.astype(jnp.float32))               # (B, C_out, C_in) f32

    # ---- Pass 2: per-sample 1x1 conv, tiled over batch and spatial ----------
    use_vpu = (C_in <= 32 and C_out <= 128)
    out = pl.pallas_call(
        partial(_cond_conv_kernel, use_vpu=use_vpu),
        out_shape=jax.ShapeDtypeStruct((B, C_out, HW_pad), x_nchw.dtype),
        grid_spec=pltpu.PrefetchScalarGridSpec(
            num_scalar_prefetch=0,
            grid=(B // bt, HW_pad // hw_tile),
            in_specs=[
                pl.BlockSpec((bt, C_out, C_in), lambda b, t: (b, 0, 0)),
                pl.BlockSpec((bt, C_in, hw_tile), lambda b, t: (b, 0, t)),
            ],
            out_specs=pl.BlockSpec((bt, C_out, hw_tile), lambda b, t: (b, 0, t)),
        ),
        compiler_params=pltpu.CompilerParams(
            dimension_semantics=("parallel", "parallel"),    # independent -> megacore
            vmem_limit_bytes=vmem_limit),
    )(w_mixed, x3)

    if HW_pad != HW:
        out = out[:, :, :HW]
    return out.reshape(B, C_out, H, W)


# --------------------------------------------------------------------------- #
# Reference + test
# --------------------------------------------------------------------------- #
def _reference(x_nchw, routing_weight, routing_bias, expert_weights):
    pooled = jnp.mean(x_nchw, axis=(2, 3))                                 # (B, C_in)
    routing = jax.nn.sigmoid(pooled @ routing_weight + routing_bias)       # (B, E)
    w = jnp.einsum("be,eoc->boc", routing, expert_weights)                 # (B, C_out, C_in)
    return jnp.einsum("boc,bchw->bohw", w, x_nchw)                         # (B, C_out, H, W)


if __name__ == "__main__":
    # Module config: in_features=4, out_features=8, kernel_size=1, num_experts=4.
    B, C_in, H, W = 2, 4, 16, 16
    C_out, E = 8, 4

    key = jax.random.PRNGKey(0)
    kx, kw, kb, ke = jax.random.split(key, 4)

    x = jax.random.normal(kx, (B, C_in, H, W), dtype=jnp.float32)
    # nn.Linear(in_features, num_experts): torch weight is (E, C_in); we store its
    # transpose (C_in, E) so routing = pooled @ Wr + br.
    routing_weight = jax.random.normal(kw, (C_in, E), dtype=jnp.float32) * 0.1
    routing_bias = jax.random.normal(kb, (E,), dtype=jnp.float32) * 0.1
    # CondConv2d weight: (num_experts, out_ch * in_ch/groups * kh * kw),
    # kh = kw = 1, groups = 1  ->  (E, C_out, C_in).
    expert_weights = jax.random.normal(ke, (E, C_out, C_in), dtype=jnp.float32) * 0.1

    y = dynamic_conv(x, routing_weight, routing_bias, expert_weights)
    y = jax.block_until_ready(y)

    y_ref = _reference(x, routing_weight, routing_bias, expert_weights)
    assert y.shape == (B, C_out, H, W)
    assert jnp.allclose(y, y_ref, atol=1e-4, rtol=1e-4)

    print("KERNEL_OK")
</pallas_src>

<mosaic_0001>
module attributes {stable_mosaic.version = 11 : i64} {
  func.func @_pool_kernel(%arg0: i32, %arg1: i32, %arg2: memref<8x256xf32, #tpu.memory_space<vmem>>, %arg3: memref<8x128xf32, #tpu.memory_space<vmem>>) attributes {dimension_semantics = [#tpu.dimension_semantics<parallel>, #tpu.dimension_semantics<arbitrary>], iteration_bounds = array<i64: 1, 1>, scalar_prefetch = 0 : i64, scratch_operands = 0 : i64, tpu.core_type = #tpu.core_type<tc>, window_params = [{transform_indices = @transform_0, window_bounds = array<i64: 8, 256>}, {transform_indices = @transform_1, window_bounds = array<i64: 8, 128>}]} {
    %c0_i32 = arith.constant 0 : i32
    %0 = arith.cmpi eq, %arg1, %c0_i32 : i32
    %1 = arith.extui %0 : i1 to i32
    %c0_i32_0 = arith.constant 0 : i32
    %2 = arith.cmpi ne, %1, %c0_i32_0 : i32
    scf.if %2 {
      %cst = arith.constant 0.000000e+00 : f32
      %9 = vector.broadcast %cst : f32 to vector<8x128xf32>
      %c0_7 = arith.constant 0 : index
      %c0_8 = arith.constant 0 : index
      %10 = vector.load %arg3[%c0_7, %c0_8] : memref<8x128xf32, #tpu.memory_space<vmem>>, vector<8x128xf32>
      tpu.vector_store %arg3[%c0_7, %c0_8], %9 {strides = array<i32>} : memref<8x128xf32, #tpu.memory_space<vmem>>, vector<8x128xf32>,
    } else {
    }
    %c0 = arith.constant 0 : index
    %c0_1 = arith.constant 0 : index
    %3 = vector.load %arg3[%c0, %c0_1] : memref<8x128xf32, #tpu.memory_space<vmem>>, vector<8x128xf32>
    %c0_2 = arith.constant 0 : index
    %c0_3 = arith.constant 0 : index
    %4 = vector.load %arg2[%c0_2, %c0_3] : memref<8x256xf32, #tpu.memory_space<vmem>>, vector<8x128xf32>
    %5 = arith.addf %3, %4 : vector<8x128xf32>
    %c0_4 = arith.constant 0 : index
    %c128 = arith.constant 128 : index
    %6 = vector.load %arg2[%c0_4, %c128] : memref<8x256xf32, #tpu.memory_space<vmem>>, vector<8x128xf32>
    %7 = arith.addf %5, %6 : vector<8x128xf32>
    %c0_5 = arith.constant 0 : index
    %c0_6 = arith.constant 0 : index
    %8 = vector.load %arg3[%c0_5, %c0_6] : memref<8x128xf32, #tpu.memory_space<vmem>>, vector<8x128xf32>
    tpu.vector_store %arg3[%c0_5, %c0_6], %7 {strides = array<i32>} : memref<8x128xf32, #tpu.memory_space<vmem>>, vector<8x128xf32>,
    return
  }
  func.func @transform_0(%arg0: i32, %arg1: i32) -> (i32, i32) {
    %c0_i32 = arith.constant 0 : i32
    return %arg0, %arg1 : i32, i32
  }
  func.func @transform_1(%arg0: i32, %arg1: i32) -> (i32, i32) {
    %c0_i32 = arith.constant 0 : i32
    %c0_i32_0 = arith.constant 0 : i32
    return %arg0, %c0_i32 : i32, i32
  }
}

</mosaic_0001>

<llo_original>
// kernel: tpu_custom_call.1
$region0: #{tpu_custom_call.1}
  #allocation0 [shape = 'u32[]', space=smem, size = 0x4, offset = 0x4, fixed_abs, tag = 'smem constant byte address 0x4 - core index']
  #allocation1 [shape = 'u32[72,128]{1,0:T(1,128)}', space=vmem, size = 0x9000, scoped, tag = 'internal scratch']
  %s0 = inlined_call_operand.hbm [shape: f32[8,256], index: 0, kind: input, shape index: {}]
  %s1 = inlined_call_operand.hbm [shape: f32[8,128], index: 1, kind: output, shape index: {}]
  %s2 = sld [smem:[#allocation0]]
  $region22: #{tpu_custom_call.1} parent=0
    _
  %s4 = ssub.s32 1, %s2
  %s5 = scalar_select 0, %s4, %s2
  $region1: #{tpu_custom_call.1} parent=0
    #allocation2 [shape = 'u8[8192]{0}', space=vmem, size = 0x2000, scoped, tag = 'input window, operand 0, single buffered']
    #allocation3 [shape = 's32[1]{0}', space=sflag, size = 0x4, scoped, tag = 'scoped memory for tpu_custom_call.1']
    #allocation4 [shape = 's32[1]{0}', space=sflag, size = 0x4, scoped, tag = 'scoped memory for tpu_custom_call.1']
    #allocation5 [shape = 'u8[4096]{0}', space=vmem, size = 0x1000, scoped, tag = 'output window, operand 0, single buffered']
    %6 = vsyncpa [#allocation3], 0
    %7 = vsyncpa [#allocation4], 0
    // Predicated region
    $region2: #{tpu_custom_call.1} parent=1 // pred_check
      _
    $region3: #{tpu_custom_call.1} parent=1 // pred_check_branch
      %9 = sbr.rel (0) target = $region5
    $region4: #{tpu_custom_call.1} parent=1 // pred_region
      %11 = vsyncadd [#allocation3], 0
      %s13 = sshll.u32 %s0, 4
      %s14 = int_to_ptr.hbm [resolvable:$true] %s13
      %s15 = sshll.u32 [#allocation2], 4
      %s16 = int_to_ptr.vmem [resolvable:$true] %s15
      %18 = dma.hbm_to_vmem [thread:$0]  %s14, 256, %s16, [#allocation3]
    $region5: #{tpu_custom_call.1} parent=1 // pred_fallthru
      _
    // Predicated region
    $region6: #{tpu_custom_call.1} parent=1 // pred_check
      _
    $region7: #{tpu_custom_call.1} parent=1 // pred_check_branch
      %20 = sbr.rel (0) target = $region9
    $region8: #{tpu_custom_call.1} parent=1 // pred_region
      %22 = dma.done [#allocation3], 256
    $region9: #{tpu_custom_call.1} parent=1 // pred_fallthru
      _
    %p23 = scmp.eq.s32.totalorder 0, 0
    // Predicated region
    $region10: #{tpu_custom_call.1} parent=1 // pred_check
      %p24 = pneg %p23
    $region11: #{tpu_custom_call.1} parent=1 // pred_check_branch
      %26 = sbr.rel (%p24) target = $region13
    $region12: #{tpu_custom_call.1} parent=1 // pred_region
      %27 = vst [vmem:[#allocation5] sm:$0xff] 0.0
    $region13: #{tpu_custom_call.1} parent=1 // pred_fallthru
      _
    %v28 = vld [vmem:[#allocation5] sm:$0xff]
    %v29 = vld [vmem:[#allocation2] sm:$0xff]
    %v30 = vadd.f32 %v28, %v29
    %v31 = vld [vmem:[#allocation2 + $0x8] sm:$0xff]
    %v32 = vadd.f32 %v30, %v31
    %33 = vst [vmem:[#allocation5] sm:$0xff] %v32
    // Predicated region
    $region14: #{tpu_custom_call.1} parent=1 // pred_check
      _
    $region15: #{tpu_custom_call.1} parent=1 // pred_check_branch
      %35 = sbr.rel (0) target = $region17
    $region16: #{tpu_custom_call.1} parent=1 // pred_region
      %37 = vsyncadd [#allocation4], 0
      %s39 = sshll.u32 [#allocation5], 4
      %s40 = int_to_ptr.vmem [resolvable:$true] %s39
      %s41 = sshll.u32 %s1, 4
      %s42 = int_to_ptr.hbm [resolvable:$true] %s41
      %44 = dma.vmem_to_hbm [thread:$0]  %s40, 128, %s42, [#allocation4]
    $region17: #{tpu_custom_call.1} parent=1 // pred_fallthru
      _
    // Predicated region
    $region18: #{tpu_custom_call.1} parent=1 // pred_check
      _
    $region19: #{tpu_custom_call.1} parent=1 // pred_check_branch
      %46 = sbr.rel (0) target = $region21
    $region20: #{tpu_custom_call.1} parent=1 // pred_region
      %48 = dma.done [#allocation4], 128
    $region21: #{tpu_custom_call.1} parent=1 // pred_fallthru
      _
    %49 = vsyncpa [#allocation3], 1
    %50 = vsyncpa [#allocation4], 1

</llo_original>
